<compile_context>
chip_gen: v5e
topology: v5e:2x2
jax: 0.10.0
libtpu: 0.0.40
codegen_flags: <defaults>
</compile_context>

<pallas_src>
import jax
import jax.numpy as jnp
from jax import lax
from jax.experimental import pallas as pl
from jax.experimental.pallas import tpu as pltpu


# ---------------------------------------------------------------------------
# Pallas kernel: 3-head GAT core over one row-tile of queries.
# scores -> LeakyReLU -> mask -> softmax -> per-head matvec against v,
# normalized AFTER the matvec, heads averaged.
# ---------------------------------------------------------------------------
def gat_3head_kernel(mask_ref, a_ref, bT_ref, v_ref, out_ref):
    # mask_ref : (tm, N)  bf16  relation mask row tile (exact small ints)
    # a_ref    : (Np, 3)  f32   query-side projection + per-head bias (resident)
    # bT_ref   : (3, N)   f32   key-side projection, transposed (resident)
    # v_ref    : (N, 1)   bf16  x_hidden @ fc_w[H:, :] (resident)
    # out_ref  : (tm, 1)  f32   sum_k softmax_k @ v / 3  for this row tile
    tm = mask_ref.shape[0]
    row0 = pl.multiple_of(pl.program_id(0) * tm, tm)
    a = a_ref[pl.ds(row0, tm), :]                    # (tm, 3) rows of resident a

    mask = mask_ref[...].astype(jnp.float32)         # (tm, N), cast once per tile
    is_zero = mask == 0.0
    bT = bT_ref[...]                                 # (3, N)
    v = v_ref[...]                                   # (N, 1) bf16

    acc = jnp.zeros((tm, 1), jnp.float32)
    for k in range(3):                               # 3 heads, unrolled
        # score[i, j] = a[i, k] + b[j, k]   (bias already folded into a)
        w = a[:, k:k + 1] + bT[k:k + 1, :]           # (tm, N) broadcast add
        w = jnp.maximum(w, 0.01 * w)                 # LeakyReLU(0.01), 2 VPU ops
        vw = jnp.where(is_zero, -1000000.0, mask * w)
        # softmax over keys, normalization deferred to after the matvec
        m = jnp.max(vw, axis=1, keepdims=True)       # XLU reduce
        e = jnp.exp(vw - m)                          # EUP
        den = jnp.sum(e, axis=1, keepdims=True)      # f32 XLU reduce (accurate)
        num = jnp.dot(e.astype(jnp.bfloat16), v,     # (tm,1) MXU matvec
                      preferred_element_type=jnp.float32)
        acc = acc + num * pl.reciprocal(den, approx=True)   # EUP reciprocal
    out_ref[...] = acc * (1.0 / 3.0)


def _pick_tm(N, block_rows=None):
    """Row-tile size: multiple of 16 (bf16 mask packing), VMEM-budget aware."""
    if block_rows is not None:
        return max(16, (int(block_rows) // 16) * 16)
    # budget model: 2x bf16 mask double-buffer (4 B/elem) + ~5 live (tm,N) f32
    # intermediates (20 B/elem) per tile, plus resident a / bT / v.
    budget = 36 * 1024 * 1024
    fixed = 2 * (N + 32) * 512 + (1 << 20)
    tm = (budget - fixed) // (24 * max(N, 1))
    tm = max(16, min(512, tm))
    tm = (tm // 16) * 16
    if N > 16:
        # keep the grid >= 2 so both v7x TensorCores get work
        tm = min(tm, (((N + 1) // 2) + 15) // 16 * 16)
    tm = min(tm, ((N + 15) // 16) * 16)
    return max(16, tm)


def gat_3heads_pallas(x_hidden, relation_matrix, W0, W1, W2, b0, b1, b2,
                      fc_w, fc_b, block_rows=None):
    x_hidden = x_hidden.astype(jnp.float32)
    N, H = x_hidden.shape
    fc_w = fc_w.astype(jnp.float32)
    fc_b = jnp.asarray(fc_b, jnp.float32).reshape(-1)

    # (N, N) relation mask, streamed as bf16 (values 0..R are exact in bf16).
    mask = jnp.sum(relation_matrix.astype(jnp.float32), axis=2).astype(jnp.bfloat16)

    # Fused head projections: one (N,H)@(H,6) matmul; cols 0:3 query, 3:6 key.
    W6 = jnp.concatenate(
        [jnp.concatenate([W0[:H], W1[:H], W2[:H]], axis=1),
         jnp.concatenate([W0[H:], W1[H:], W2[H:]], axis=1)],
        axis=1).astype(jnp.float32)                                   # (H, 6)
    proj = x_hidden @ W6                                              # (N, 6)
    head_bias = jnp.stack([jnp.asarray(b0, jnp.float32),
                           jnp.asarray(b1, jnp.float32),
                           jnp.asarray(b2, jnp.float32)])             # (3,)
    a = proj[:, 0:3] + head_bias[None, :]                             # bias folded
    bT = proj[:, 3:6].T                                               # (3, N)

    # fc fold: hidden only feeds hidden @ fc_w[H:], so contract attention
    # weights against v = x_hidden @ fc_w[H:] (N,1) instead of x_hidden (N,H).
    v = (x_hidden @ fc_w[H:, :]).astype(jnp.bfloat16)                 # (N, 1)

    tm = _pick_tm(N, block_rows)
    n_tiles = -(-N // tm)
    Np = n_tiles * tm
    if Np != N:
        # Row-pad queries only (keys stay exact, so real rows are unaffected;
        # padded rows produce values that the [:N] slice below discards).
        mask = jnp.pad(mask, ((0, Np - N), (0, 0)))
        a = jnp.pad(a, ((0, Np - N), (0, 0)))

    gat = pl.pallas_call(
        gat_3head_kernel,
        out_shape=jax.ShapeDtypeStruct((Np, 1), jnp.float32),
        grid_spec=pltpu.PrefetchScalarGridSpec(
            num_scalar_prefetch=0,
            grid=(n_tiles,),
            in_specs=[
                pl.BlockSpec((tm, N), lambda i: (i, 0)),     # bf16 mask tile
                pl.BlockSpec((Np, 3), lambda i: (0, 0)),     # a resident
                pl.BlockSpec((3, N), lambda i: (0, 0)),      # bT resident
                pl.BlockSpec((N, 1), lambda i: (0, 0)),      # v resident
            ],
            out_specs=pl.BlockSpec((tm, 1), lambda i: (i, 0)),
        ),
        compiler_params=pltpu.CompilerParams(
            dimension_semantics=("parallel",),
            vmem_limit_bytes=48 * 1024 * 1024),
    )(mask, a, bT, v)

    gat = gat[:N, 0]                                                  # (N,)
    pred = (x_hidden @ fc_w[:H, :])[:, 0] + gat + fc_b[0]
    return pred


# ---------------------------------------------------------------------------
# Plain-JAX glue: 2-layer GRU (batch_first, PyTorch gate ordering r, z, n).
# Input projection is hoisted out of the scan (one matmul per layer).
# ---------------------------------------------------------------------------
def gru_forward(x_seq, layers):
    h_in = x_seq.astype(jnp.float32)                     # (N, T, in_dim)
    for (Wih, Whh, bih, bhh) in layers:
        N = h_in.shape[0]
        H = Whh.shape[1]
        gi_all = jnp.einsum('nti,gi->ntg', h_in, Wih) + bih   # (N, T, 3H)
        h0 = jnp.zeros((N, H), jnp.float32)

        def step(h, gi_t):
            gh = h @ Whh.T + bhh
            i_r, i_z, i_n = jnp.split(gi_t, 3, axis=1)
            h_r, h_z, h_n = jnp.split(gh, 3, axis=1)
            r = jax.nn.sigmoid(i_r + h_r)
            z = jax.nn.sigmoid(i_z + h_z)
            n = jnp.tanh(i_n + r * h_n)
            h_new = (1.0 - z) * n + z * h
            return h_new, h_new

        _, ys = lax.scan(step, h0, jnp.swapaxes(gi_all, 0, 1))
        h_in = jnp.swapaxes(ys, 0, 1)                    # (N, T, H)
    return h_in


def model_forward(x, relation_matrix, params, block_rows=None):
    d_feat = params["d_feat"]
    N = x.shape[0]
    xh = x.reshape(N, d_feat, -1)                        # (N, d_feat, T)
    xh = jnp.transpose(xh, (0, 2, 1))                    # (N, T, d_feat)
    xh = gru_forward(xh, params["gru"])                  # (N, T, H)
    x_hidden = xh[:, -1, :]                              # (N, H)
    return gat_3heads_pallas(x_hidden, relation_matrix,
                             params["W0"], params["W1"], params["W2"],
                             params["b0"], params["b1"], params["b2"],
                             params["fc_w"], params["fc_b"],
                             block_rows=block_rows)


# ---------------------------------------------------------------------------
# Pure-JAX reference of the GAT part (mirrors torch semantics) for validation.
# ---------------------------------------------------------------------------
def reference_gat(x_hidden, relation_matrix, W0, W1, W2, b0, b1, b2, fc_w, fc_b):
    N, H = x_hidden.shape
    ei = jnp.repeat(x_hidden[:, None, :], N, axis=1)
    hb = jnp.repeat(x_hidden[None, :, :], N, axis=0)
    matrix = jnp.concatenate([ei, hb], axis=2)           # (N, N, 2H)
    mask = jnp.sum(relation_matrix, axis=2)

    def head(W, b):
        w = (matrix @ W)[..., 0] + b
        w = jnp.where(w >= 0, w, 0.01 * w)
        vw = mask * w
        vw = jnp.where(mask == 0, -1000000.0, vw)
        vw = jax.nn.softmax(vw, axis=1)
        return vw @ x_hidden

    hidden = (head(W0, b0) + head(W1, b1) + head(W2, b2)) / 3.0
    cat = jnp.concatenate([x_hidden, hidden], axis=1)
    return (cat @ fc_w)[:, 0] + fc_b[0]


# ---------------------------------------------------------------------------
# Deterministic parameter init + example run
# ---------------------------------------------------------------------------
def init_params(key, d_feat, hidden_size, num_layers):
    keys = jax.random.split(key, 16)
    H = hidden_size
    gru = []
    in_dim = d_feat
    for l in range(num_layers):
        k0, k1, k2, k3 = jax.random.split(keys[l], 4)
        Wih = 0.1 * jax.random.normal(k0, (3 * H, in_dim), jnp.float32)
        Whh = 0.1 * jax.random.normal(k1, (3 * H, H), jnp.float32)
        bih = 0.1 * jax.random.normal(k2, (3 * H,), jnp.float32)
        bhh = 0.1 * jax.random.normal(k3, (3 * H,), jnp.float32)
        gru.append((Wih, Whh, bih, bhh))
        in_dim = H
    xav = (2.0 / (2 * H + 1)) ** 0.5
    params = {
        "d_feat": d_feat,
        "gru": gru,
        "W0": xav * jax.random.normal(keys[4], (2 * H, 1), jnp.float32),
        "W1": xav * jax.random.normal(keys[5], (2 * H, 1), jnp.float32),
        "W2": xav * jax.random.normal(keys[6], (2 * H, 1), jnp.float32),
        "b0": jnp.float32(0.0),
        "b1": jnp.float32(0.0),
        "b2": jnp.float32(0.0),
        "fc_w": 0.1 * jax.random.normal(keys[7], (2 * H, 1), jnp.float32),
        "fc_b": 0.05 * jax.random.normal(keys[8], (1,), jnp.float32),
    }
    return params


if __name__ == "__main__":
    key = jax.random.PRNGKey(0)
    N, d_feat, T, H, R = 40, 6, 8, 32, 3

    k_x, k_rel, k_p = jax.random.split(key, 3)
    x = jax.random.normal(k_x, (N, d_feat * T), jnp.float32)
    relation_matrix = (jax.random.uniform(k_rel, (N, N, R)) > 0.5).astype(jnp.float32)

    params = init_params(k_p, d_feat, H, num_layers=2)

    # block_rows=16 with N=40 exercises a 3-tile grid plus the row-padding path
    # (Np=48, last 8 rows padded and discarded).
    pred = model_forward(x, relation_matrix, params, block_rows=16)
    pred = jax.block_until_ready(pred)

    # Correctness check of the Pallas GAT path vs a pure-f32 JAX reference.
    # Tolerance accounts for bf16 mask/probability operands, the bf16 v vector
    # and the approx reciprocal in the kernel.
    xh = x.reshape(N, d_feat, -1)
    xh = jnp.transpose(xh, (0, 2, 1))
    xh = gru_forward(xh, params["gru"])[:, -1, :]
    ref = reference_gat(xh, relation_matrix,
                        params["W0"], params["W1"], params["W2"],
                        params["b0"], params["b1"], params["b2"],
                        params["fc_w"], params["fc_b"])
    if not jnp.allclose(pred, ref, atol=5e-3, rtol=5e-3):
        raise AssertionError("Pallas kernel does not match reference")

    print("KERNEL_OK")
</pallas_src>

<mosaic_0001>
module attributes {stable_mosaic.version = 11 : i64} {
  func.func @gat_3head_kernel(%arg0: i32, %arg1: memref<16x40xbf16, #tpu.memory_space<vmem>>, %arg2: memref<48x3xf32, #tpu.memory_space<vmem>>, %arg3: memref<3x40xf32, #tpu.memory_space<vmem>>, %arg4: memref<40x1xbf16, #tpu.memory_space<vmem>>, %arg5: memref<16x1xf32, #tpu.memory_space<vmem>>) attributes {dimension_semantics = [#tpu.dimension_semantics<parallel>], iteration_bounds = array<i64: 3>, scalar_prefetch = 0 : i64, scratch_operands = 0 : i64, tpu.core_type = #tpu.core_type<tc>, window_params = [{transform_indices = @transform_0, window_bounds = array<i64: 16, 40>}, {pipeline_mode = #tpu.pipeline_mode<synchronous>, transform_indices = @transform_1, window_bounds = array<i64: 48, 3>}, {pipeline_mode = #tpu.pipeline_mode<synchronous>, transform_indices = @transform_2, window_bounds = array<i64: 3, 40>}, {pipeline_mode = #tpu.pipeline_mode<synchronous>, transform_indices = @transform_3, window_bounds = array<i64: 40, 1>}, {transform_indices = @transform_4, window_bounds = array<i64: 16, 1>}]} {
    %c16_i32 = arith.constant 16 : i32
    %0 = arith.muli %arg0, %c16_i32 : i32
    %1 = tpu.assume_multiple %0, 16 : i32
    %2 = arith.index_cast %1 : i32 to index
    %c0 = arith.constant 0 : index
    %3 = vector.load %arg2[%2, %c0] : memref<48x3xf32, #tpu.memory_space<vmem>>, vector<16x3xf32>
    %c0_0 = arith.constant 0 : index
    %c0_1 = arith.constant 0 : index
    %4 = vector.load %arg1[%c0_0, %c0_1] : memref<16x40xbf16, #tpu.memory_space<vmem>>, vector<16x40xbf16>
    %5 = arith.extf %4 : vector<16x40xbf16> to vector<16x40xf32>
    %cst = arith.constant 0.000000e+00 : f32
    %6 = vector.broadcast %cst : f32 to vector<16x40xf32>
    %7 = arith.cmpf oeq, %5, %6 : vector<16x40xf32>
    %c0_2 = arith.constant 0 : index
    %c0_3 = arith.constant 0 : index
    %8 = vector.load %arg3[%c0_2, %c0_3] : memref<3x40xf32, #tpu.memory_space<vmem>>, vector<3x40xf32>
    %c0_4 = arith.constant 0 : index
    %c0_5 = arith.constant 0 : index
    %9 = vector.load %arg4[%c0_4, %c0_5] : memref<40x1xbf16, #tpu.memory_space<vmem>>, vector<40x1xbf16>
    %cst_6 = arith.constant 0.000000e+00 : f32
    %10 = vector.broadcast %cst_6 : f32 to vector<16x1xf32>
    %11 = vector.extract_strided_slice %3 {offsets = [0, 0], sizes = [16, 1], strides = [1, 1]} : vector<16x3xf32> to vector<16x1xf32>
    %12 = vector.extract_strided_slice %8 {offsets = [0, 0], sizes = [1, 40], strides = [1, 1]} : vector<3x40xf32> to vector<1x40xf32>
    %13 = vector.broadcast %11 : vector<16x1xf32> to vector<16x40xf32>
    %14 = vector.broadcast %12 : vector<1x40xf32> to vector<16x40xf32>
    %15 = arith.addf %13, %14 : vector<16x40xf32>
    %cst_7 = arith.constant 0.00999999977 : f32
    %16 = vector.broadcast %cst_7 : f32 to vector<16x40xf32>
    %17 = arith.mulf %16, %15 : vector<16x40xf32>
    %18 = arith.maximumf %15, %17 : vector<16x40xf32>
    %19 = arith.mulf %5, %18 : vector<16x40xf32>
    %cst_8 = arith.constant -1.000000e+06 : f32
    %20 = vector.broadcast %cst_8 : f32 to vector<16x40xf32>
    %21 = arith.select %7, %20, %19 : vector<16x40xi1>, vector<16x40xf32>
    %cst_9 = arith.constant dense<0xFF800000> : vector<16xf32>
    %22 = vector.multi_reduction <maximumf>, %21, %cst_9 [1] : vector<16x40xf32> to vector<16xf32>
    %23 = vector.shape_cast %22 : vector<16xf32> to vector<16x1xf32>
    %24 = vector.broadcast %23 : vector<16x1xf32> to vector<16x40xf32>
    %25 = arith.subf %21, %24 : vector<16x40xf32>
    %26 = math.exp %25 : vector<16x40xf32>
    %cst_10 = arith.constant dense<0.000000e+00> : vector<16xf32>
    %27 = vector.multi_reduction <add>, %26, %cst_10 [1] : vector<16x40xf32> to vector<16xf32>
    %28 = vector.shape_cast %27 : vector<16xf32> to vector<16x1xf32>
    %29 = arith.truncf %26 : vector<16x40xf32> to vector<16x40xbf16>
    %cst_11 = arith.constant dense<0.000000e+00> : vector<16x1xf32>
    %30 = tpu.matmul %29, %9, %cst_11 {dimension_numbers = #tpu.dot_dimension_numbers<[1], [0], [0], [1], [0, 0, 1, 1], [], []>} : vector<16x40xbf16>, vector<40x1xbf16>, vector<16x1xf32> -> vector<16x1xf32>
    %31 = tpu.reciprocal %28 {approx = true} : vector<16x1xf32> -> vector<16x1xf32>
    %32 = arith.mulf %30, %31 : vector<16x1xf32>
    %33 = arith.addf %10, %32 : vector<16x1xf32>
    %34 = vector.extract_strided_slice %3 {offsets = [0, 1], sizes = [16, 1], strides = [1, 1]} : vector<16x3xf32> to vector<16x1xf32>
    %35 = vector.extract_strided_slice %8 {offsets = [1, 0], sizes = [1, 40], strides = [1, 1]} : vector<3x40xf32> to vector<1x40xf32>
    %36 = vector.broadcast %34 : vector<16x1xf32> to vector<16x40xf32>
    %37 = vector.broadcast %35 : vector<1x40xf32> to vector<16x40xf32>
    %38 = arith.addf %36, %37 : vector<16x40xf32>
    %cst_12 = arith.constant 0.00999999977 : f32
    %39 = vector.broadcast %cst_12 : f32 to vector<16x40xf32>
    %40 = arith.mulf %39, %38 : vector<16x40xf32>
    %41 = arith.maximumf %38, %40 : vector<16x40xf32>
    %42 = arith.mulf %5, %41 : vector<16x40xf32>
    %cst_13 = arith.constant -1.000000e+06 : f32
    %43 = vector.broadcast %cst_13 : f32 to vector<16x40xf32>
    %44 = arith.select %7, %43, %42 : vector<16x40xi1>, vector<16x40xf32>
    %cst_14 = arith.constant dense<0xFF800000> : vector<16xf32>
    %45 = vector.multi_reduction <maximumf>, %44, %cst_14 [1] : vector<16x40xf32> to vector<16xf32>
    %46 = vector.shape_cast %45 : vector<16xf32> to vector<16x1xf32>
    %47 = vector.broadcast %46 : vector<16x1xf32> to vector<16x40xf32>
    %48 = arith.subf %44, %47 : vector<16x40xf32>
    %49 = math.exp %48 : vector<16x40xf32>
    %cst_15 = arith.constant dense<0.000000e+00> : vector<16xf32>
    %50 = vector.multi_reduction <add>, %49, %cst_15 [1] : vector<16x40xf32> to vector<16xf32>
    %51 = vector.shape_cast %50 : vector<16xf32> to vector<16x1xf32>
    %52 = arith.truncf %49 : vector<16x40xf32> to vector<16x40xbf16>
    %cst_16 = arith.constant dense<0.000000e+00> : vector<16x1xf32>
    %53 = tpu.matmul %52, %9, %cst_16 {dimension_numbers = #tpu.dot_dimension_numbers<[1], [0], [0], [1], [0, 0, 1, 1], [], []>} : vector<16x40xbf16>, vector<40x1xbf16>, vector<16x1xf32> -> vector<16x1xf32>
    %54 = tpu.reciprocal %51 {approx = true} : vector<16x1xf32> -> vector<16x1xf32>
    %55 = arith.mulf %53, %54 : vector<16x1xf32>
    %56 = arith.addf %33, %55 : vector<16x1xf32>
    %57 = vector.extract_strided_slice %3 {offsets = [0, 2], sizes = [16, 1], strides = [1, 1]} : vector<16x3xf32> to vector<16x1xf32>
    %58 = vector.extract_strided_slice %8 {offsets = [2, 0], sizes = [1, 40], strides = [1, 1]} : vector<3x40xf32> to vector<1x40xf32>
    %59 = vector.broadcast %57 : vector<16x1xf32> to vector<16x40xf32>
    %60 = vector.broadcast %58 : vector<1x40xf32> to vector<16x40xf32>
    %61 = arith.addf %59, %60 : vector<16x40xf32>
    %cst_17 = arith.constant 0.00999999977 : f32
    %62 = vector.broadcast %cst_17 : f32 to vector<16x40xf32>
    %63 = arith.mulf %62, %61 : vector<16x40xf32>
    %64 = arith.maximumf %61, %63 : vector<16x40xf32>
    %65 = arith.mulf %5, %64 : vector<16x40xf32>
    %cst_18 = arith.constant -1.000000e+06 : f32
    %66 = vector.broadcast %cst_18 : f32 to vector<16x40xf32>
    %67 = arith.select %7, %66, %65 : vector<16x40xi1>, vector<16x40xf32>
    %cst_19 = arith.constant dense<0xFF800000> : vector<16xf32>
    %68 = vector.multi_reduction <maximumf>, %67, %cst_19 [1] : vector<16x40xf32> to vector<16xf32>
    %69 = vector.shape_cast %68 : vector<16xf32> to vector<16x1xf32>
    %70 = vector.broadcast %69 : vector<16x1xf32> to vector<16x40xf32>
    %71 = arith.subf %67, %70 : vector<16x40xf32>
    %72 = math.exp %71 : vector<16x40xf32>
    %cst_20 = arith.constant dense<0.000000e+00> : vector<16xf32>
    %73 = vector.multi_reduction <add>, %72, %cst_20 [1] : vector<16x40xf32> to vector<16xf32>
    %74 = vector.shape_cast %73 : vector<16xf32> to vector<16x1xf32>
    %75 = arith.truncf %72 : vector<16x40xf32> to vector<16x40xbf16>
    %cst_21 = arith.constant dense<0.000000e+00> : vector<16x1xf32>
    %76 = tpu.matmul %75, %9, %cst_21 {dimension_numbers = #tpu.dot_dimension_numbers<[1], [0], [0], [1], [0, 0, 1, 1], [], []>} : vector<16x40xbf16>, vector<40x1xbf16>, vector<16x1xf32> -> vector<16x1xf32>
    %77 = tpu.reciprocal %74 {approx = true} : vector<16x1xf32> -> vector<16x1xf32>
    %78 = arith.mulf %76, %77 : vector<16x1xf32>
    %79 = arith.addf %56, %78 : vector<16x1xf32>
    %cst_22 = arith.constant 0.333333343 : f32
    %80 = vector.broadcast %cst_22 : f32 to vector<16x1xf32>
    %81 = arith.mulf %79, %80 : vector<16x1xf32>
    %c0_23 = arith.constant 0 : index
    %c0_24 = arith.constant 0 : index
    %82 = vector.load %arg5[%c0_23, %c0_24] : memref<16x1xf32, #tpu.memory_space<vmem>>, vector<16x1xf32>
    tpu.vector_store %arg5[%c0_23, %c0_24], %81 {strides = array<i32>} : memref<16x1xf32, #tpu.memory_space<vmem>>, vector<16x1xf32>,
    return
  }
  func.func @transform_0(%arg0: i32) -> (i32, i32) {
    %c0_i32 = arith.constant 0 : i32
    %c0_i32_0 = arith.constant 0 : i32
    return %arg0, %c0_i32 : i32, i32
  }
  func.func @transform_1(%arg0: i32) -> (i32, i32) {
    %c0_i32 = arith.constant 0 : i32
    %c0_i32_0 = arith.constant 0 : i32
    %c0_i32_1 = arith.constant 0 : i32
    return %c0_i32, %c0_i32_0 : i32, i32
  }
  func.func @transform_2(%arg0: i32) -> (i32, i32) {
    %c0_i32 = arith.constant 0 : i32
    %c0_i32_0 = arith.constant 0 : i32
    %c0_i32_1 = arith.constant 0 : i32
    return %c0_i32, %c0_i32_0 : i32, i32
  }
  func.func @transform_3(%arg0: i32) -> (i32, i32) {
    %c0_i32 = arith.constant 0 : i32
    %c0_i32_0 = arith.constant 0 : i32
    %c0_i32_1 = arith.constant 0 : i32
    return %c0_i32, %c0_i32_0 : i32, i32
  }
  func.func @transform_4(%arg0: i32) -> (i32, i32) {
    %c0_i32 = arith.constant 0 : i32
    %c0_i32_0 = arith.constant 0 : i32
    return %arg0, %c0_i32 : i32, i32
  }
}

</mosaic_0001>

<llo_original>
// kernel: tpu_custom_call.1
$region0: #{tpu_custom_call.1}
  #allocation0 [shape = 'u32[]', space=smem, size = 0x4, offset = 0x4, fixed_abs, tag = 'smem constant byte address 0x4 - core index']
  #allocation1 [shape = 'u32[72,128]{1,0:T(1,128)}', space=vmem, size = 0x9000, scoped, tag = 'internal scratch']
  %s0 = inlined_call_operand.vmem [shape: bf16[48,40], index: 0, kind: input, shape index: {}]
  %s1 = inlined_call_operand.vmem [shape: f32[48,3], index: 1, kind: input, shape index: {}]
  %s2 = inlined_call_operand.vmem [shape: f32[3,40], index: 2, kind: input, shape index: {}]
  %s3 = inlined_call_operand.vmem [shape: bf16[40,1], index: 3, kind: input, shape index: {}]
  %s4 = inlined_call_operand.vmem [shape: f32[48,1], index: 4, kind: output, shape index: {}]
  %s5 = sld [smem:[#allocation0]]
  $region49: #{tpu_custom_call.1} parent=0
    _
  %s7 = ssub.s32 1, %s5
  %s8 = scalar_select 0, %s7, %s5
  loop: start=0, step=1, limit=5
  $region2: #{tpu_custom_call.1} parent=0 // loop_pre_header
    _
  $region3: #{tpu_custom_call.1} parent=0 // loop_header
    %s10 = sphi 0, %s14
    %p11 = scmp.ge.s32.totalorder %s10, 5
    %s20 = sphi 0, %s22
    %s23 = sphi 0, %s20
    %s24 = sphi 0, %s23
    %s40 = sphi 0, %s24
    %s44 = sphi 0, %s44
    %s46 = sphi 0, %s44
    %s47 = sphi 0, %s46
    %s61 = sphi 0, %s47
    %s65 = sphi 0, %s65
    %s67 = sphi 0, %s65
    %s68 = sphi 0, %s67
    %s82 = sphi 0, %s68
    %s86 = sphi 0, %s86
    %s88 = sphi 0, %s86
    %s89 = sphi 0, %s88
    %s103 = sphi 0, %s89
    %s109 = sphi 0, %s111
    %s112 = sphi 0, %s109
    %s113 = sphi 0, %s112
    %s129 = sphi 0, %s113
  $region4: #{tpu_custom_call.1} parent=0 // loop_header_branch
    %13 = sbr.rel (%p11) target = $region8
  $region5: #{tpu_custom_call.1} parent=0 // loop_body
    %s15 = ssub.s32 %s10, 1
    %s16 = ssub.s32 %s10, 2
    %s17 = sadd.s32 %s10, 1
    %s18 = ssub.s32 %s10, %s17
    %p19 = scmp.eq.s32.totalorder %s18, 0
    %s21 = sadd.s32 %s20, 1
    %s22 = scalar_select %p19, %s20, %s21
    %p25 = pneg %p19
    %p26 = scmp.eq.s32.totalorder %s10, 2
    %p27 = por %p25, %p26
    %p28 = scmp.ne.s32.totalorder %s20, %s23
    %p29 = scmp.eq.s32.totalorder %s10, 0
    %p30 = por %p28, %p29
    %p31 = scmp.ne.s32.totalorder %s20, %s23
    %p32 = scmp.eq.s32.totalorder %s15, 2
    %p33 = por %p31, %p32
    %p34 = scmp.ne.s32.totalorder %s23, %s24
    %p35 = scmp.eq.s32.totalorder %s15, 0
    %p36 = por %p34, %p35
    %p37 = scmp.ne.s32.totalorder %s23, %s24
    %p38 = scmp.eq.s32.totalorder %s16, 2
    %p39 = por %p37, %p38
    %p41 = scmp.ne.s32.totalorder %s24, %s40
    %p42 = scmp.eq.s32.totalorder %s16, 0
    %p43 = por %p41, %p42
    %s45 = sadd.s32 %s44, 1
    %p48 = scmp.eq.s32.totalorder %s10, 2
    %p49 = scmp.ne.s32.totalorder %s44, %s46
    %p50 = scmp.eq.s32.totalorder %s10, 0
    %p51 = por %p49, %p50
    %p52 = scmp.ne.s32.totalorder %s44, %s46
    %p53 = scmp.eq.s32.totalorder %s15, 2
    %p54 = por %p52, %p53
    %p55 = scmp.ne.s32.totalorder %s46, %s47
    %p56 = scmp.eq.s32.totalorder %s15, 0
    %p57 = por %p55, %p56
    %p58 = scmp.ne.s32.totalorder %s46, %s47
    %p59 = scmp.eq.s32.totalorder %s16, 2
    %p60 = por %p58, %p59
    %p62 = scmp.ne.s32.totalorder %s47, %s61
    %p63 = scmp.eq.s32.totalorder %s16, 0
    %p64 = por %p62, %p63
    %s66 = sadd.s32 %s65, 1
    %p69 = scmp.eq.s32.totalorder %s10, 2
    %p70 = scmp.ne.s32.totalorder %s65, %s67
    %p71 = scmp.eq.s32.totalorder %s10, 0
    %p72 = por %p70, %p71
    %p73 = scmp.ne.s32.totalorder %s65, %s67
    %p74 = scmp.eq.s32.totalorder %s15, 2
    %p75 = por %p73, %p74
    %p76 = scmp.ne.s32.totalorder %s67, %s68
    %p77 = scmp.eq.s32.totalorder %s15, 0
    %p78 = por %p76, %p77
    %p79 = scmp.ne.s32.totalorder %s67, %s68
    %p80 = scmp.eq.s32.totalorder %s16, 2
    %p81 = por %p79, %p80
    %p83 = scmp.ne.s32.totalorder %s68, %s82
    %p84 = scmp.eq.s32.totalorder %s16, 0
    %p85 = por %p83, %p84
    %s87 = sadd.s32 %s86, 1
    %p90 = scmp.eq.s32.totalorder %s10, 2
    %p91 = scmp.ne.s32.totalorder %s86, %s88
    %p92 = scmp.eq.s32.totalorder %s10, 0
    %p93 = por %p91, %p92
    %p94 = scmp.ne.s32.totalorder %s86, %s88
    %p95 = scmp.eq.s32.totalorder %s15, 2
    %p96 = por %p94, %p95
    %p97 = scmp.ne.s32.totalorder %s88, %s89
    %p98 = scmp.eq.s32.totalorder %s15, 0
    %p99 = por %p97, %p98
    %p100 = scmp.ne.s32.totalorder %s88, %s89
    %p101 = scmp.eq.s32.totalorder %s16, 2
    %p102 = por %p100, %p101
    %p104 = scmp.ne.s32.totalorder %s89, %s103
    %p105 = scmp.eq.s32.totalorder %s16, 0
    %p106 = por %p104, %p105
    %s107 = ssub.s32 %s10, %s17
    %p108 = scmp.eq.s32.totalorder %s107, 0
    %s110 = sadd.s32 %s109, 1
    %s111 = scalar_select %p108, %s109, %s110
    %p114 = pneg %p108
    %p115 = scmp.eq.s32.totalorder %s10, 2
    %p116 = por %p114, %p115
    %p117 = scmp.ne.s32.totalorder %s109, %s112
    %p118 = scmp.eq.s32.totalorder %s10, 0
    %p119 = por %p117, %p118
    %p120 = scmp.ne.s32.totalorder %s109, %s112
    %p121 = scmp.eq.s32.totalorder %s15, 2
    %p122 = por %p120, %p121
    %p123 = scmp.ne.s32.totalorder %s112, %s113
    %p124 = scmp.eq.s32.totalorder %s15, 0
    %p125 = por %p123, %p124
    %p126 = scmp.ne.s32.totalorder %s112, %s113
    %p127 = scmp.eq.s32.totalorder %s16, 2
    %p128 = por %p126, %p127
    %p130 = scmp.ne.s32.totalorder %s113, %s129
    %p131 = scmp.eq.s32.totalorder %s16, 0
    %p132 = por %p130, %p131
    %p133 = scmp.le.s32.totalorder 1, %s10
    %p134 = scmp.lt.s32.totalorder %s10, 4
    %p135 = pnand %p133, %p134
    %p136 = pneg %p135
    // Predicated region
    $region9: #{tpu_custom_call.1} parent=5 // pred_check
      _
    $region10: #{tpu_custom_call.1} parent=5 // pred_check_branch
      %138 = sbr.rel (%p135) target = $region12
    $region11: #{tpu_custom_call.1} parent=5 // pred_region
      %s139 = ssub.s32 %s10, 1
      // Predicated region
      $region13: #{tpu_custom_call.1} parent=11 // pred_check
        %p140 = pneg %p57
      $region14: #{tpu_custom_call.1} parent=11 // pred_check_branch
        %142 = sbr.rel (%p140) target = $region16
      $region15: #{tpu_custom_call.1} parent=11 // pred_region
        _
      $region16: #{tpu_custom_call.1} parent=11 // pred_fallthru
        _
      // Predicated region
      $region17: #{tpu_custom_call.1} parent=11 // pred_check
        %p143 = pneg %p78
      $region18: #{tpu_custom_call.1} parent=11 // pred_check_branch
        %145 = sbr.rel (%p143) target = $region20
      $region19: #{tpu_custom_call.1} parent=11 // pred_region
        _
      $region20: #{tpu_custom_call.1} parent=11 // pred_fallthru
        _
      // Predicated region
      $region21: #{tpu_custom_call.1} parent=11 // pred_check
        %p146 = pneg %p99
      $region22: #{tpu_custom_call.1} parent=11 // pred_check_branch
        %148 = sbr.rel (%p146) target = $region24
      $region23: #{tpu_custom_call.1} parent=11 // pred_region
        _
      $region24: #{tpu_custom_call.1} parent=11 // pred_fallthru
        _
    $region12: #{tpu_custom_call.1} parent=5 // pred_fallthru
      _
    %p149 = scmp.lt.s32.totalorder %s10, 3
    // Predicated region
    $region25: #{tpu_custom_call.1} parent=5 // pred_check
      %p150 = pneg %p149
    $region26: #{tpu_custom_call.1} parent=5 // pred_check_branch
      %152 = sbr.rel (%p150) target = $region28
    $region27: #{tpu_custom_call.1} parent=5 // pred_region
      // Predicated region
      $region29: #{tpu_custom_call.1} parent=27 // pred_check
        %p153 = pneg %p30
      $region30: #{tpu_custom_call.1} parent=27 // pred_check_branch
        %155 = sbr.rel (%p153) target = $region32
      $region31: #{tpu_custom_call.1} parent=27 // pred_region
        %s156 = smul.u32 2, %s10
        %p157 = scmp.lt.s32.totalorder %s156, 5
        %s158 = scalar_select %p157, %s156, 5
        %s159 = smul.addr %s158, 4
        %s160 = scalar_lea.vmem %s0, %s159
        %s161 = smul.u32 2, %s10
      $region32: #{tpu_custom_call.1} parent=27 // pred_fallthru
        _
    $region28: #{tpu_custom_call.1} parent=5 // pred_fallthru
      _
    %p162 = scmp.le.s32.totalorder 1, %s10
    %p163 = scmp.lt.s32.totalorder %s10, 4
    %p164 = pnand %p162, %p163
    %p165 = pneg %p164
    // Predicated region
    $region33: #{tpu_custom_call.1} parent=5 // pred_check
      _
    $region34: #{tpu_custom_call.1} parent=5 // pred_check_branch
      %167 = sbr.rel (%p164) target = $region36
    $region35: #{tpu_custom_call.1} parent=5 // pred_region
      %s168 = ssub.s32 %s10, 1
      %s169 = smul.u32 2, %s15
      %p170 = scmp.lt.s32.totalorder %s169, 5
      %s171 = scalar_select %p170, %s169, 5
      %s172 = smul.addr %s171, 4
      %s173 = scalar_lea.vmem %s0, %s172
      %p174 = pneg %p36
      %p175 = pneg %p33
      %p176 = pneg %p57
      %p177 = pneg %p54
      %p178 = pneg %p78
      %p179 = pneg %p75
      %p180 = pneg %p99
      %p181 = pneg %p96
      %p182 = pneg %p125
      %p183 = pneg %p122
      %s184 = smul.u32 2, %s15
      %p185 = scmp.lt.s32.totalorder %s184, 5
      %s186 = scalar_select %p185, %s184, 5
      %s187 = smul.addr %s186, 8
      %s188 = scalar_lea.vmem %s4, %s187
      %s189 = smul.u32 2, %s15
      %p190 = scmp.lt.s32.totalorder %s189, 5
      %s191 = scalar_select %p190, %s189, 5
      %s192 = smul.addr %s191, 4
      %s193 = scalar_lea.vmem %s0, %s192
      %s194 = smul.u32 2, %s15
      %s195 = smul.u32 2, %s15
      %p196 = scmp.lt.s32.totalorder %s195, 5
      %s197 = scalar_select %p196, %s195, 5
      %s198 = smul.addr %s197, 8
      %s199 = scalar_lea.vmem %s4, %s198
      %s200 = smul.u32 2, %s15
      %s202 = smul.u32 %s15, 16
      %s203 = scalar_lea.vmem %s1, %s202
      %v204 = vld [vmem:[%s203] sm:$0xff]
      %v205 = vld [vmem:[%s203 + $0x8] sm:$0xff]
      %v206 = vld [vmem:[%s193] sm:$0xf]
      %v207 = vld [vmem:[%s193 + $0x4] sm:$0xf]
      %v208 = vunpack.c.l.bf16 %v206
      %v209 = vunpack.c.l.bf16 %v207
      %vm210 = vcmp.eq.f32.partialorder %v208, 0.0
      %vm211 = vcmp.eq.f32.partialorder %v209, 0.0
      %v212 = vld [vmem:[%s2] sm:$0x7]
      %v213 = vld [vmem:[%s3] sm:$0xf]
      %v214 = vld [vmem:[%s3 + $0x4] sm:$0xf]
      %v215 = vld [vmem:[%s3 + $0x8] sm:$0xf]
      %v216 = vld [vmem:[%s3 + $0xc] sm:$0xf]
      %v217 = vld [vmem:[%s3 + $0x10] sm:$0xf]
      %219 = vset.pattern.permute.xlu0 0
      %220 = vperm.xlu0 %219, %v204
      %v221 = vpop.permute.xlu0 %220
      %224 = vset.pattern.permute.xlu0 0
      %225 = vperm.xlu0 %224, %v205
      %v226 = vpop.permute.xlu0 %225
      %v228 = vperm.slane %v212, 0
      %v229 = vadd.f32 %v221, %v228
      %v230 = vadd.f32 %v226, %v228
      %v231 = vmul.f32 %v229, 0.01
      %v232 = vmul.f32 %v230, 0.01
      %v233 = vmax.f32 %v229, %v231
      %v234 = vmax.f32 %v230, %v232
      %v235 = vmul.f32 %v208, %v233
      %v236 = vmul.f32 %v209, %v234
      %v237 = vsel %vm210, -1000000.0, %v235
      %v238 = vsel %vm211, -1000000.0, %v236
      %vm239 = vcmask 326656
      %v240 = vsel %vm239, %v237, -inf
      %241 = vmax.xlane.f32.xlu0 %v240
      %v242 = vpop.xlane.xlu0 %241
      %v243 = vsel %vm239, %v238, -inf
      %244 = vmax.xlane.f32.xlu0 %v243
      %v245 = vpop.xlane.xlu0 %244
      %v246 = vsub.f32 %v237, %v242
      %v247 = vsub.f32 %v238, %v245
      %v248 = vmul.f32 %v246, 1.442695
      %v249 = vpow.pop %v248
      %v250 = vmul.f32 %v247, 1.442695
      %v251 = vpow.pop %v250
      %v252 = vsel %vm239, %v249, 0.0
      %253 = vadd.xlane.f32.xlu0 %v252
      %v254 = vpop.xlane.xlu0 %253
      %v255 = vsel %vm239, %v251, 0.0
      %256 = vadd.xlane.f32.xlu0 %v255
      %v257 = vpop.xlane.xlu0 %256
      %v258 = vpack.c.bf16 %v251, %v249
      %v264 = vunpack.c.l.b16 %v213
      %v265 = vunpack.c.l.b16 %v214
      %v266 = vunpack.c.l.b16 %v215
      %v267 = vunpack.c.l.b16 %v216
      %v268 = vunpack.c.l.b16 %v217
      %v269 = vpack.c.b16 %v265, %v264
      %v270 = vpack.c.b16 %v267, %v266
      %v271 = vpack.c.b16 %v268, %v268
      %v275 = vsel %vm239, %v258, 0
      %vm277 = vcmask 1043456
      %v279 = vsel %vm277, %v271, 0
      %281 = vmatpush.bf16.msra.mxu0 0
      %282 = vmatpush.bf16.msra.mxu0 0
      %283 = vmatpush.bf16.msra.mxu0 0
      %284 = vmatpush.bf16.msra.mxu0 0
      %285 = vmatpush.bf16.msra.mxu0 0
      %286 = vmatpush.bf16.msra.mxu0 %v279
      %287 = vmatpush.bf16.msra.mxu0 %v270
      %288 = vmatpush.bf16.msra.mxu0 %v269
      %289 = vmatmul.bf16.gmra.mxu0 %v275
      %v290 = vpop.f32.mrf.mxu0
      %v291 = vadd.f32 0.0, %v290
      %v292 = vpop.f32.mrf.mxu0
      %v293 = vadd.f32 0.0, %v292
      %294 = vdwg.mxu0
      %v295 = vrcp.pop %v254
      %v296 = vrcp.pop %v257
      %v297 = vmul.f32 %v291, %v295
      %v298 = vmul.f32 %v293, %v296
      %v299 = vadd.f32 %v297, 0.0
      %v300 = vadd.f32 %v298, 0.0
      %301 = vset.pattern.permute.xlu0 1
      %302 = vperm.xlu0 %301, %v204
      %v303 = vpop.permute.xlu0 %302
      %305 = vset.pattern.permute.xlu0 1
      %306 = vperm.xlu0 %305, %v205
      %v307 = vpop.permute.xlu0 %306
      %v309 = vperm.slane %v212, 1
      %v310 = vadd.f32 %v303, %v309
      %v311 = vadd.f32 %v307, %v309
      %v312 = vmul.f32 %v310, 0.01
      %v313 = vmul.f32 %v311, 0.01
      %v314 = vmax.f32 %v310, %v312
      %v315 = vmax.f32 %v311, %v313
      %v316 = vmul.f32 %v208, %v314
      %v317 = vmul.f32 %v209, %v315
      %v318 = vsel %vm210, -1000000.0, %v316
      %v319 = vsel %vm211, -1000000.0, %v317
      %v320 = vsel %vm239, %v318, -inf
      %321 = vmax.xlane.f32.xlu0 %v320
      %v322 = vpop.xlane.xlu0 %321
      %v323 = vsel %vm239, %v319, -inf
      %324 = vmax.xlane.f32.xlu0 %v323
      %v325 = vpop.xlane.xlu0 %324
      %v326 = vsub.f32 %v318, %v322
      %v327 = vsub.f32 %v319, %v325
      %v328 = vmul.f32 %v326, 1.442695
      %v329 = vpow.pop %v328
      %v330 = vmul.f32 %v327, 1.442695
      %v331 = vpow.pop %v330
      %v332 = vsel %vm239, %v329, 0.0
      %333 = vadd.xlane.f32.xlu0 %v332
      %v334 = vpop.xlane.xlu0 %333
      %v335 = vsel %vm239, %v331, 0.0
      %336 = vadd.xlane.f32.xlu0 %v335
      %v337 = vpop.xlane.xlu0 %336
      %v338 = vpack.c.bf16 %v331, %v329
      %v340 = vsel %vm239, %v338, 0
      %342 = vmatpush.bf16.msra.mxu0 0
      %343 = vmatpush.bf16.msra.mxu0 0
      %344 = vmatpush.bf16.msra.mxu0 0
      %345 = vmatpush.bf16.msra.mxu0 0
      %346 = vmatpush.bf16.msra.mxu0 0
      %347 = vmatpush.bf16.msra.mxu0 %v279
      %348 = vmatpush.bf16.msra.mxu0 %v270
      %349 = vmatpush.bf16.msra.mxu0 %v269
      %350 = vmatmul.bf16.gmra.mxu0 %v340
      %v351 = vpop.f32.mrf.mxu0
      %v352 = vadd.f32 0.0, %v351
      %v353 = vpop.f32.mrf.mxu0
      %v354 = vadd.f32 0.0, %v353
      %355 = vdwg.mxu0
      %v356 = vrcp.pop %v334
      %v357 = vrcp.pop %v337
      %v358 = vmul.f32 %v352, %v356
      %v359 = vmul.f32 %v354, %v357
      %v360 = vadd.f32 %v299, %v358
      %v361 = vadd.f32 %v300, %v359
      %362 = vset.pattern.permute.xlu0 2
      %363 = vperm.xlu0 %362, %v204
      %v364 = vpop.permute.xlu0 %363
      %366 = vset.pattern.permute.xlu0 2
      %367 = vperm.xlu0 %366, %v205
      %v368 = vpop.permute.xlu0 %367
      %v370 = vperm.slane %v212, 2
      %v371 = vadd.f32 %v364, %v370
      %v372 = vadd.f32 %v368, %v370
      %v373 = vmul.f32 %v371, 0.01
      %v374 = vmul.f32 %v372, 0.01
      %v375 = vmax.f32 %v371, %v373
      %v376 = vmax.f32 %v372, %v374
      %v377 = vmul.f32 %v208, %v375
      %v378 = vmul.f32 %v209, %v376
      %v379 = vsel %vm210, -1000000.0, %v377
      %v380 = vsel %vm211, -1000000.0, %v378
      %v381 = vsel %vm239, %v379, -inf
      %382 = vmax.xlane.f32.xlu0 %v381
      %v383 = vpop.xlane.xlu0 %382
      %v384 = vsel %vm239, %v380, -inf
      %385 = vmax.xlane.f32.xlu0 %v384
      %v386 = vpop.xlane.xlu0 %385
      %v387 = vsub.f32 %v379, %v383
      %v388 = vsub.f32 %v380, %v386
      %v389 = vmul.f32 %v387, 1.442695
      %v390 = vpow.pop %v389
      %v391 = vmul.f32 %v388, 1.442695
      %v392 = vpow.pop %v391
      %v393 = vsel %vm239, %v390, 0.0
      %394 = vadd.xlane.f32.xlu0 %v393
      %v395 = vpop.xlane.xlu0 %394
      %v396 = vsel %vm239, %v392, 0.0
      %397 = vadd.xlane.f32.xlu0 %v396
      %v398 = vpop.xlane.xlu0 %397
      %v399 = vpack.c.bf16 %v392, %v390
      %v401 = vsel %vm239, %v399, 0
      %403 = vmatpush.bf16.msra.mxu0 0
      %404 = vmatpush.bf16.msra.mxu0 0
      %405 = vmatpush.bf16.msra.mxu0 0
      %406 = vmatpush.bf16.msra.mxu0 0
      %407 = vmatpush.bf16.msra.mxu0 0
      %408 = vmatpush.bf16.msra.mxu0 %v279
      %409 = vmatpush.bf16.msra.mxu0 %v270
      %410 = vmatpush.bf16.msra.mxu0 %v269
      %411 = vmatmul.bf16.gmra.mxu0 %v401
      %v412 = vpop.f32.mrf.mxu0
      %v413 = vadd.f32 0.0, %v412
      %v414 = vpop.f32.mrf.mxu0
      %v415 = vadd.f32 0.0, %v414
      %416 = vdwg.mxu0
      %v417 = vrcp.pop %v395
      %v418 = vrcp.pop %v398
      %v419 = vmul.f32 %v413, %v417
      %v420 = vmul.f32 %v415, %v418
      %v421 = vadd.f32 %v360, %v419
      %v422 = vadd.f32 %v361, %v420
      %v423 = vmul.f32 %v421, 0.33333334
      %v424 = vmul.f32 %v422, 0.33333334
      %vm425 = vcmask 7168
      %426 = vst.msk [vmem:[%s199] sm:$0xff] %vm425, %v423
      %427 = vst.msk [vmem:[%s199 + $0x8] sm:$0xff] %vm425, %v424
      %s428 = smul.u32 2, %s15
      %p429 = scmp.lt.s32.totalorder %s428, 5
      %s430 = scalar_select %p429, %s428, 5
      %s431 = smul.addr %s430, 8
      %s432 = scalar_lea.vmem %s4, %s431
      // Predicated region
      $region37: #{tpu_custom_call.1} parent=35 // pred_check
        %p433 = pneg %p122
      $region38: #{tpu_custom_call.1} parent=35 // pred_check_branch
        %435 = sbr.rel (%p433) target = $region40
      $region39: #{tpu_custom_call.1} parent=35 // pred_region
        %s436 = smul.u32 2, %s15
      $region40: #{tpu_custom_call.1} parent=35 // pred_fallthru
        _
    $region36: #{tpu_custom_call.1} parent=5 // pred_fallthru
      _
    %p437 = scmp.le.s32.totalorder 2, %s10
    // Predicated region
    $region41: #{tpu_custom_call.1} parent=5 // pred_check
      %p438 = pneg %p437
    $region42: #{tpu_custom_call.1} parent=5 // pred_check_branch
      %440 = sbr.rel (%p438) target = $region44
    $region43: #{tpu_custom_call.1} parent=5 // pred_region
      %s441 = ssub.s32 %s10, 2
      // Predicated region
      $region45: #{tpu_custom_call.1} parent=43 // pred_check
        %p442 = pneg %p128
      $region46: #{tpu_custom_call.1} parent=43 // pred_check_branch
        %444 = sbr.rel (%p442) target = $region48
      $region47: #{tpu_custom_call.1} parent=43 // pred_region
        %s445 = smul.u32 2, %s16
        %p446 = scmp.lt.s32.totalorder %s445, 5
        %s447 = scalar_select %p446, %s445, 5
        %s448 = smul.addr %s447, 8
        %s449 = scalar_lea.vmem %s4, %s448
      $region48: #{tpu_custom_call.1} parent=43 // pred_fallthru
        _
    $region44: #{tpu_custom_call.1} parent=5 // pred_fallthru
      _
  $region6: #{tpu_custom_call.1} parent=0 // loop_footer
    %s14 = sadd.s32 1, %s10
  $region7: #{tpu_custom_call.1} parent=0 // loop_footer_branch
    %9 = sbr.rel target = $region3
  $region8: #{tpu_custom_call.1} parent=0 // loop_exit
    _

</llo_original>
